<compile_context>
chip_gen: v6e
topology: v6e:2x2x1
jax: 0.10.0
libtpu: 0.0.40
codegen_flags: <defaults>
</compile_context>

<pallas_src>
import jax
import jax.numpy as jnp
from jax import lax
from jax.experimental import pallas as pl
from jax.experimental.pallas import tpu as pltpu


def _attention_fusion_kernel(x_ref, w1_ref, b1_ref, w2_ref, b2_ref, kmat_ref,
                             bias_ref, o_ref):
    """Fused channel + spatial attention for one batch element.

    x_ref:   (1, C, S)   spatially flattened input (S = H*W, lane-dense)
    w1_ref:  (Cr, C)     Linear(C -> Cr) weight (torch orientation)
    b1_ref:  (Cr, 1)
    w2_ref:  (C, Cr)     Linear(Cr -> C) weight
    b2_ref:  (C, 1)
    kmat_ref:(2S, S)     folded BN * 7x7 conv as a dense matrix over flattened space
    bias_ref:(1,) SMEM   effective conv bias (conv bias + BN shift folded)
    o_ref:   (1, C, S)
    """
    x = x_ref[0].astype(jnp.float32)                        # (C, S)
    C, S = x.shape
    inv_s = 1.0 / S

    # ---- Channel attention: sigmoid(MLP(avg_pool) + MLP(max_pool)) ----
    avg = jnp.sum(x, axis=1, keepdims=True) * inv_s         # (C, 1)  lane reduction
    mx = jnp.max(x, axis=1, keepdims=True)                  # (C, 1)
    pooled = jnp.concatenate([avg, mx], axis=1)             # (C, 2): col0=avg, col1=max

    # Column-oriented MLP (MXU-native, no in-kernel transposes).
    h = jnp.dot(w1_ref[...], pooled,
                preferred_element_type=jnp.float32) + b1_ref[...]        # (Cr, 2)
    h = jnp.maximum(h, 0.0)
    att = jnp.dot(w2_ref[...], h, preferred_element_type=jnp.float32)    # (C, 2)
    # mlp(avg) + mlp(max) = W2 h_avg + W2 h_max + 2*b2
    att_sum = att[:, 0:1] + att[:, 1:2] + 2.0 * b2_ref[...]              # (C, 1)
    y = x * jax.nn.sigmoid(att_sum)                         # (C, S) channel-attended

    # ---- Spatial attention (lane-dense; conv as one MXU matmul) ----
    inv_c = 1.0 / C
    ch_max = jnp.max(y, axis=0, keepdims=True)              # (1, S)  sublane reduction
    ch_mean = jnp.sum(y, axis=0, keepdims=True) * inv_c     # (1, S)
    comp = jnp.concatenate([ch_max, ch_mean], axis=1)       # (1, 2S)
    z = jnp.dot(comp, kmat_ref[...],
                preferred_element_type=jnp.float32)         # (1, S) conv+BN (no bias)
    z = z + bias_ref[0]
    s = jax.nn.sigmoid(jnp.maximum(z, 0.0))                 # (1, S) spatial scale
    o_ref[0] = (y * s).astype(o_ref.dtype)                  # sublane broadcast of s


def _conv_bn_matrix(conv_w, conv_b, gamma, beta, mean, var, H, W, eps):
    """Fold BN (running stats) into the 7x7 conv and express it as a (2*H*W, H*W) matrix."""
    K, P = 7, 3
    a = gamma / jnp.sqrt(var + eps)
    w_eff = (a * conv_w).astype(jnp.float32)                             # (2, 7, 7)
    bias_eff = (a * conv_b + (beta - a * mean)).reshape(1).astype(jnp.float32)

    hh = jnp.arange(H)
    ww = jnp.arange(W)
    dh = hh[:, None] - hh[None, :] + P                                   # (Hs, Ho)
    dw = ww[:, None] - ww[None, :] + P                                   # (Ws, Wo)
    vh = (dh >= 0) & (dh < K)
    vw = (dw >= 0) & (dw < K)
    # k4[c, hs, ho, ws, wo] = w_eff[c, hs-ho+P, ws-wo+P] where tap offsets are valid.
    k4 = w_eff[:, jnp.clip(dh, 0, K - 1)[:, :, None, None],
               jnp.clip(dw, 0, K - 1)[None, None, :, :]]                 # (2,Hs,Ho,Ws,Wo)
    valid = (vh[:, :, None, None] & vw[None, None, :, :]).astype(jnp.float32)
    k4 = k4 * valid
    # rows: (c, hs, ws) flattened to match [ch_max_flat | ch_mean_flat]; cols: (ho, wo)
    kmat = k4.transpose(0, 1, 3, 2, 4).reshape(2 * H * W, H * W)
    return kmat, bias_eff


def attention_fusion(x, params, *, eps=1e-5):
    """x: (B, C, H, W). params: dict of f32 arrays. Returns (B, C, H, W)."""
    B, C, H, W = x.shape
    S = H * W
    w1 = params["w1"].astype(jnp.float32)                    # (Cr, C)
    b1 = params["b1"].reshape(-1, 1).astype(jnp.float32)     # (Cr, 1)
    w2 = params["w2"].astype(jnp.float32)                    # (C, Cr)
    b2 = params["b2"].reshape(-1, 1).astype(jnp.float32)     # (C, 1)
    cr = w1.shape[0]

    kmat, bias_eff = _conv_bn_matrix(
        params["conv_w"], params["conv_b"], params["bn_gamma"], params["bn_beta"],
        params["bn_mean"], params["bn_var"], H, W, eps)

    out = pl.pallas_call(
        _attention_fusion_kernel,
        grid=(B,),
        in_specs=[
            pl.BlockSpec((1, C, S), lambda b: (b, 0, 0)),       # x, lane-dense (C, 256)
            pl.BlockSpec((cr, C), lambda b: (0, 0)),
            pl.BlockSpec((cr, 1), lambda b: (0, 0)),
            pl.BlockSpec((C, cr), lambda b: (0, 0)),
            pl.BlockSpec((C, 1), lambda b: (0, 0)),
            pl.BlockSpec((2 * S, S), lambda b: (0, 0)),         # conv matrix, fetched once
            pl.BlockSpec(memory_space=pltpu.MemorySpace.SMEM),  # effective conv bias
        ],
        out_specs=pl.BlockSpec((1, C, S), lambda b: (b, 0, 0)),
        out_shape=jax.ShapeDtypeStruct((B, C, S), x.dtype),
        compiler_params=pltpu.CompilerParams(
            dimension_semantics=("parallel",),    # batch axis shards across TCs (v7x)
            vmem_limit_bytes=32 * 1024 * 1024,    # v7x-safe scoped VMEM budget
        ),
    )(x.reshape(B, C, S), w1, b1, w2, b2, kmat, bias_eff)
    return out.reshape(B, C, H, W)


def _reference(x, params, *, eps=1e-5):
    """Pure-JAX reference of AttentionFusion.forward (inference-mode BN)."""
    hp = lax.Precision.HIGHEST
    w1, b1, w2, b2 = params["w1"], params["b1"], params["w2"], params["b2"]
    avg = jnp.mean(x, axis=(2, 3))
    mx = jnp.max(x, axis=(2, 3))

    def mlp(v):
        h = jnp.maximum(jnp.dot(v, w1.T, precision=hp) + b1[None, :], 0.0)
        return jnp.dot(h, w2.T, precision=hp) + b2[None, :]

    scale = jax.nn.sigmoid(mlp(avg) + mlp(mx))[:, :, None, None]
    y = x * scale
    comp = jnp.stack([jnp.max(y, axis=1), jnp.mean(y, axis=1)], axis=1)   # (B, 2, H, W)
    z = lax.conv_general_dilated(
        comp, params["conv_w"][None].astype(jnp.float32),
        window_strides=(1, 1), padding=((3, 3), (3, 3)),
        dimension_numbers=("NCHW", "OIHW", "NCHW"), precision=hp) + params["conv_b"]
    a = params["bn_gamma"] / jnp.sqrt(params["bn_var"] + eps)
    z = a * (z - params["bn_mean"]) + params["bn_beta"]
    s = jax.nn.sigmoid(jnp.maximum(z, 0.0))                               # (B, 1, H, W)
    return y * s


if __name__ == "__main__":
    B, C, H, W = 2, 32, 16, 16
    reduction = 16
    Cr = C // reduction

    key = jax.random.PRNGKey(0)
    ks = jax.random.split(key, 7)
    x = jax.random.normal(ks[0], (B, C, H, W), dtype=jnp.float32)
    params = dict(
        w1=0.2 * jax.random.normal(ks[1], (Cr, C), jnp.float32),
        b1=0.1 * jax.random.normal(ks[2], (Cr,), jnp.float32),
        w2=0.2 * jax.random.normal(ks[3], (C, Cr), jnp.float32),
        b2=0.1 * jax.random.normal(ks[4], (C,), jnp.float32),
        conv_w=0.1 * jax.random.normal(ks[5], (2, 7, 7), jnp.float32),
        conv_b=0.1 * jax.random.normal(ks[6], (), jnp.float32),
        bn_gamma=jnp.float32(1.0),
        bn_beta=jnp.float32(0.0),
        bn_mean=jnp.float32(0.0),
        bn_var=jnp.float32(1.0),
    )

    out = attention_fusion(x, params)
    out = jax.block_until_ready(out)

    ref = _reference(x, params)
    assert out.shape == (B, C, H, W)
    err = float(jnp.max(jnp.abs(out - ref)))
    assert jnp.allclose(out, ref, atol=5e-3, rtol=5e-3), err

    print("KERNEL_OK")
</pallas_src>

<mosaic_0001>
module attributes {stable_mosaic.version = 11 : i64} {
  func.func @_attention_fusion_kernel(%arg0: i32, %arg1: memref<1x32x256xf32, #tpu.memory_space<vmem>>, %arg2: memref<2x32xf32, #tpu.memory_space<vmem>>, %arg3: memref<2x1xf32, #tpu.memory_space<vmem>>, %arg4: memref<32x2xf32, #tpu.memory_space<vmem>>, %arg5: memref<32x1xf32, #tpu.memory_space<vmem>>, %arg6: memref<512x256xf32, #tpu.memory_space<vmem>>, %arg7: memref<1xf32, #tpu.memory_space<smem>>, %arg8: memref<1x32x256xf32, #tpu.memory_space<vmem>>) attributes {dimension_semantics = [#tpu.dimension_semantics<parallel>], iteration_bounds = array<i64: 2>, scalar_prefetch = 0 : i64, scratch_operands = 0 : i64, tpu.core_type = #tpu.core_type<tc>, window_params = [{transform_indices = @transform_0, window_bounds = array<i64: 1, 32, 256>}, {pipeline_mode = #tpu.pipeline_mode<synchronous>, transform_indices = @transform_1, window_bounds = array<i64: 2, 32>}, {pipeline_mode = #tpu.pipeline_mode<synchronous>, transform_indices = @transform_2, window_bounds = array<i64: 2, 1>}, {pipeline_mode = #tpu.pipeline_mode<synchronous>, transform_indices = @transform_3, window_bounds = array<i64: 32, 2>}, {pipeline_mode = #tpu.pipeline_mode<synchronous>, transform_indices = @transform_4, window_bounds = array<i64: 32, 1>}, {pipeline_mode = #tpu.pipeline_mode<synchronous>, transform_indices = @transform_5, window_bounds = array<i64: 512, 256>}, {transform_indices = @transform_6, window_bounds = array<i64: 1>}, {transform_indices = @transform_7, window_bounds = array<i64: 1, 32, 256>}]} {
    %c0 = arith.constant 0 : index
    %c0_0 = arith.constant 0 : index
    %c0_1 = arith.constant 0 : index
    %0 = vector.load %arg1[%c0, %c0_0, %c0_1] : memref<1x32x256xf32, #tpu.memory_space<vmem>>, vector<1x32x256xf32>
    %1 = vector.shape_cast %0 : vector<1x32x256xf32> to vector<32x256xf32>
    %cst = arith.constant dense<0.000000e+00> : vector<32xf32>
    %2 = vector.multi_reduction <add>, %1, %cst [1] : vector<32x256xf32> to vector<32xf32>
    %3 = vector.shape_cast %2 : vector<32xf32> to vector<32x1xf32>
    %cst_2 = arith.constant 3.906250e-03 : f32
    %4 = vector.broadcast %cst_2 : f32 to vector<32x1xf32>
    %5 = arith.mulf %3, %4 : vector<32x1xf32>
    %cst_3 = arith.constant dense<0xFF800000> : vector<32xf32>
    %6 = vector.multi_reduction <maximumf>, %1, %cst_3 [1] : vector<32x256xf32> to vector<32xf32>
    %7 = vector.shape_cast %6 : vector<32xf32> to vector<32x1xf32>
    %8 = tpu.concatenate %5, %7 in 1 : vector<32x1xf32>, vector<32x1xf32> -> vector<32x2xf32>
    %c0_4 = arith.constant 0 : index
    %c0_5 = arith.constant 0 : index
    %9 = vector.load %arg2[%c0_4, %c0_5] : memref<2x32xf32, #tpu.memory_space<vmem>>, vector<2x32xf32>
    %cst_6 = arith.constant dense<0.000000e+00> : vector<2x2xf32>
    %10 = tpu.matmul %9, %8, %cst_6 {dimension_numbers = #tpu.dot_dimension_numbers<[1], [0], [0], [1], [0, 0, 1, 1], [], []>} : vector<2x32xf32>, vector<32x2xf32>, vector<2x2xf32> -> vector<2x2xf32>
    %c0_7 = arith.constant 0 : index
    %c0_8 = arith.constant 0 : index
    %11 = vector.load %arg3[%c0_7, %c0_8] : memref<2x1xf32, #tpu.memory_space<vmem>>, vector<2x1xf32>
    %12 = vector.broadcast %11 : vector<2x1xf32> to vector<2x2xf32>
    %13 = arith.addf %10, %12 : vector<2x2xf32>
    %cst_9 = arith.constant 0.000000e+00 : f32
    %14 = vector.broadcast %cst_9 : f32 to vector<2x2xf32>
    %15 = arith.maximumf %13, %14 : vector<2x2xf32>
    %c0_10 = arith.constant 0 : index
    %c0_11 = arith.constant 0 : index
    %16 = vector.load %arg4[%c0_10, %c0_11] : memref<32x2xf32, #tpu.memory_space<vmem>>, vector<32x2xf32>
    %cst_12 = arith.constant dense<0.000000e+00> : vector<32x2xf32>
    %17 = tpu.matmul %16, %15, %cst_12 {dimension_numbers = #tpu.dot_dimension_numbers<[1], [0], [0], [1], [0, 0, 1, 1], [], []>} : vector<32x2xf32>, vector<2x2xf32>, vector<32x2xf32> -> vector<32x2xf32>
    %18 = vector.extract_strided_slice %17 {offsets = [0, 0], sizes = [32, 1], strides = [1, 1]} : vector<32x2xf32> to vector<32x1xf32>
    %19 = vector.extract_strided_slice %17 {offsets = [0, 1], sizes = [32, 1], strides = [1, 1]} : vector<32x2xf32> to vector<32x1xf32>
    %20 = arith.addf %18, %19 : vector<32x1xf32>
    %c0_13 = arith.constant 0 : index
    %c0_14 = arith.constant 0 : index
    %21 = vector.load %arg5[%c0_13, %c0_14] : memref<32x1xf32, #tpu.memory_space<vmem>>, vector<32x1xf32>
    %cst_15 = arith.constant 2.000000e+00 : f32
    %22 = vector.broadcast %cst_15 : f32 to vector<32x1xf32>
    %23 = arith.mulf %22, %21 : vector<32x1xf32>
    %24 = arith.addf %20, %23 : vector<32x1xf32>
    %25 = arith.negf %24 : vector<32x1xf32>
    %26 = math.exp %25 : vector<32x1xf32>
    %cst_16 = arith.constant 1.000000e+00 : f32
    %27 = vector.broadcast %cst_16 : f32 to vector<32x1xf32>
    %28 = arith.addf %27, %26 : vector<32x1xf32>
    %29 = arith.divf %27, %28 : vector<32x1xf32>
    %30 = vector.broadcast %29 : vector<32x1xf32> to vector<32x256xf32>
    %31 = arith.mulf %1, %30 : vector<32x256xf32>
    %cst_17 = arith.constant dense<0xFF800000> : vector<256xf32>
    %32 = vector.multi_reduction <maximumf>, %31, %cst_17 [0] : vector<32x256xf32> to vector<256xf32>
    %33 = vector.shape_cast %32 : vector<256xf32> to vector<1x256xf32>
    %cst_18 = arith.constant dense<0.000000e+00> : vector<256xf32>
    %34 = vector.multi_reduction <add>, %31, %cst_18 [0] : vector<32x256xf32> to vector<256xf32>
    %35 = vector.shape_cast %34 : vector<256xf32> to vector<1x256xf32>
    %cst_19 = arith.constant 3.125000e-02 : f32
    %36 = vector.broadcast %cst_19 : f32 to vector<1x256xf32>
    %37 = arith.mulf %35, %36 : vector<1x256xf32>
    %38 = tpu.concatenate %33, %37 in 1 : vector<1x256xf32>, vector<1x256xf32> -> vector<1x512xf32>
    %c0_20 = arith.constant 0 : index
    %c0_21 = arith.constant 0 : index
    %39 = vector.load %arg6[%c0_20, %c0_21] : memref<512x256xf32, #tpu.memory_space<vmem>>, vector<512x256xf32>
    %cst_22 = arith.constant dense<0.000000e+00> : vector<1x256xf32>
    %40 = tpu.matmul %38, %39, %cst_22 {dimension_numbers = #tpu.dot_dimension_numbers<[1], [0], [0], [1], [0, 0, 1, 1], [], []>} : vector<1x512xf32>, vector<512x256xf32>, vector<1x256xf32> -> vector<1x256xf32>
    %c0_23 = arith.constant 0 : index
    %41 = memref.load %arg7[%c0_23] : memref<1xf32, #tpu.memory_space<smem>>
    %42 = vector.broadcast %41 : f32 to vector<1x256xf32>
    %43 = arith.addf %40, %42 : vector<1x256xf32>
    %cst_24 = arith.constant 0.000000e+00 : f32
    %44 = vector.broadcast %cst_24 : f32 to vector<1x256xf32>
    %45 = arith.maximumf %43, %44 : vector<1x256xf32>
    %46 = arith.negf %45 : vector<1x256xf32>
    %47 = math.exp %46 : vector<1x256xf32>
    %cst_25 = arith.constant 1.000000e+00 : f32
    %48 = vector.broadcast %cst_25 : f32 to vector<1x256xf32>
    %49 = arith.addf %48, %47 : vector<1x256xf32>
    %50 = arith.divf %48, %49 : vector<1x256xf32>
    %51 = vector.broadcast %50 : vector<1x256xf32> to vector<32x256xf32>
    %52 = arith.mulf %31, %51 : vector<32x256xf32>
    %c0_26 = arith.constant 0 : index
    %c0_27 = arith.constant 0 : index
    %c0_28 = arith.constant 0 : index
    %53 = vector.load %arg8[%c0_26, %c0_27, %c0_28] : memref<1x32x256xf32, #tpu.memory_space<vmem>>, vector<1x32x256xf32>
    %54 = vector.shape_cast %53 : vector<1x32x256xf32> to vector<32x256xf32>
    %55 = vector.shape_cast %52 : vector<32x256xf32> to vector<1x32x256xf32>
    tpu.vector_store %arg8[%c0_26, %c0_27, %c0_28], %55 {strides = array<i32>} : memref<1x32x256xf32, #tpu.memory_space<vmem>>, vector<1x32x256xf32>,
    return
  }
  func.func @transform_0(%arg0: i32) -> (i32, i32, i32) {
    %c0_i32 = arith.constant 0 : i32
    %c0_i32_0 = arith.constant 0 : i32
    %c0_i32_1 = arith.constant 0 : i32
    return %arg0, %c0_i32, %c0_i32_0 : i32, i32, i32
  }
  func.func @transform_1(%arg0: i32) -> (i32, i32) {
    %c0_i32 = arith.constant 0 : i32
    %c0_i32_0 = arith.constant 0 : i32
    %c0_i32_1 = arith.constant 0 : i32
    return %c0_i32, %c0_i32_0 : i32, i32
  }
  func.func @transform_2(%arg0: i32) -> (i32, i32) {
    %c0_i32 = arith.constant 0 : i32
    %c0_i32_0 = arith.constant 0 : i32
    %c0_i32_1 = arith.constant 0 : i32
    return %c0_i32, %c0_i32_0 : i32, i32
  }
  func.func @transform_3(%arg0: i32) -> (i32, i32) {
    %c0_i32 = arith.constant 0 : i32
    %c0_i32_0 = arith.constant 0 : i32
    %c0_i32_1 = arith.constant 0 : i32
    return %c0_i32, %c0_i32_0 : i32, i32
  }
  func.func @transform_4(%arg0: i32) -> (i32, i32) {
    %c0_i32 = arith.constant 0 : i32
    %c0_i32_0 = arith.constant 0 : i32
    %c0_i32_1 = arith.constant 0 : i32
    return %c0_i32, %c0_i32_0 : i32, i32
  }
  func.func @transform_5(%arg0: i32) -> (i32, i32) {
    %c0_i32 = arith.constant 0 : i32
    %c0_i32_0 = arith.constant 0 : i32
    %c0_i32_1 = arith.constant 0 : i32
    return %c0_i32, %c0_i32_0 : i32, i32
  }
  func.func @transform_6(%arg0: i32) -> i32 {
    %c0_i32 = arith.constant 0 : i32
    %c0_i32_0 = arith.constant 0 : i32
    return %c0_i32 : i32
  }
  func.func @transform_7(%arg0: i32) -> (i32, i32, i32) {
    %c0_i32 = arith.constant 0 : i32
    %c0_i32_0 = arith.constant 0 : i32
    %c0_i32_1 = arith.constant 0 : i32
    return %arg0, %c0_i32, %c0_i32_0 : i32, i32, i32
  }
}

</mosaic_0001>

<llo_original>
// kernel: tpu_custom_call.1
$region0: #{tpu_custom_call.1}
  #allocation0 [shape = 'u32[]', space=smem, size = 0x4, offset = 0x4, fixed_abs, tag = 'smem constant byte address 0x4 - core index']
  #allocation1 [shape = 'u32[144,128]{1,0:T(1,128)}', space=vmem, size = 0x12000, scoped, tag = 'internal scratch']
  #allocation2 [shape = 'f32[1]{0:T(128)S(6)}', space=smem, size = 0x200, scoped, tag = 'scoped memory for tpu_custom_call.1']
  %s0 = inlined_call_operand.hbm [shape: f32[2,32,256], index: 0, kind: input, shape index: {}]
  %s1 = inlined_call_operand.vmem [shape: f32[2,32], index: 1, kind: input, shape index: {}]
  %s2 = inlined_call_operand.vmem [shape: f32[2,1], index: 2, kind: input, shape index: {}]
  %s3 = inlined_call_operand.vmem [shape: f32[32,2], index: 3, kind: input, shape index: {}]
  %s4 = inlined_call_operand.vmem [shape: f32[32,1], index: 4, kind: input, shape index: {}]
  %s5 = inlined_call_operand.hbm [shape: f32[512,256], index: 5, kind: input, shape index: {}]
  %s6 = inlined_call_operand.<no memory space> [shape: f32[1], index: 6, kind: input, shape index: {}]
  %s7 = inlined_call_operand.hbm [shape: f32[2,32,256], index: 7, kind: output, shape index: {}]
  %s8 = sld [smem:[#allocation0]]
  $region69: #{tpu_custom_call.1} parent=0
    _
  %s10 = ssub.s32 1, %s8
  %s11 = scalar_select 0, %s10, %s8
  %12 = sst [smem:[#allocation2]] %s6
  $region1: #{tpu_custom_call.1} parent=0
    #allocation3 [shape = 'u8[65536]{0}', space=vmem, size = 0x10000, scoped, tag = 'input window, operand 0']
    #allocation4 [shape = 's32[2]{0}', space=sflag, size = 0x8, scoped, tag = 'scoped memory for tpu_custom_call.1']
    #allocation5 [shape = 's32[2]{0}', space=sflag, size = 0x8, scoped, tag = 'scoped memory for tpu_custom_call.1']
    #allocation6 [shape = 'u8[524288]{0}', space=vmem, size = 0x80000, scoped, tag = 'input window, operand 5, single buffered']
    #allocation7 [shape = 's32[1]{0}', space=sflag, size = 0x4, scoped, tag = 'scoped memory for tpu_custom_call.1']
    #allocation8 [shape = 'u8[65536]{0}', space=vmem, size = 0x10000, scoped, tag = 'output window, operand 0']
    %13 = vsyncpa [#allocation4], 0
    %s14 = scalar_lea.sflag [#allocation4], 1
    %15 = vsyncpa %s14, 0
    %16 = vsyncpa [#allocation7], 0
    %17 = vsyncpa [#allocation5], 0
    %s18 = scalar_lea.sflag [#allocation5], 1
    %19 = vsyncpa %s18, 0
    loop: start=0, step=1, limit=4
    $region2: #{tpu_custom_call.1} parent=1 // loop_pre_header
      _
    $region3: #{tpu_custom_call.1} parent=1 // loop_header
      %s21 = sphi 0, %s25
      %p22 = scmp.ge.s32.totalorder %s21, 4
      %s31 = sphi 0, %s33
      %s34 = sphi 0, %s31
      %s35 = sphi 0, %s34
      %s51 = sphi 0, %s35
      %s55 = sphi 0, %s55
      %s57 = sphi 0, %s55
      %s58 = sphi 0, %s57
      %s72 = sphi 0, %s58
      %s76 = sphi 0, %s76
      %s78 = sphi 0, %s76
      %s79 = sphi 0, %s78
      %s93 = sphi 0, %s79
      %s97 = sphi 0, %s97
      %s99 = sphi 0, %s97
      %s100 = sphi 0, %s99
      %s114 = sphi 0, %s100
      %s118 = sphi 0, %s118
      %s120 = sphi 0, %s118
      %s121 = sphi 0, %s120
      %s135 = sphi 0, %s121
      %s139 = sphi 0, %s139
      %s141 = sphi 0, %s139
      %s142 = sphi 0, %s141
      %s156 = sphi 0, %s142
      %s160 = sphi 0, %s160
      %s162 = sphi 0, %s160
      %s163 = sphi 0, %s162
      %s177 = sphi 0, %s163
      %s183 = sphi 0, %s185
      %s186 = sphi 0, %s183
      %s187 = sphi 0, %s186
      %s203 = sphi 0, %s187
    $region4: #{tpu_custom_call.1} parent=1 // loop_header_branch
      %24 = sbr.rel (%p22) target = $region8
    $region5: #{tpu_custom_call.1} parent=1 // loop_body
      %s26 = ssub.s32 %s21, 1
      %s27 = ssub.s32 %s21, 2
      %s28 = sadd.s32 %s21, 1
      %s29 = ssub.s32 %s21, %s28
      %p30 = scmp.eq.s32.totalorder %s29, 0
      %s32 = sadd.s32 %s31, 1
      %s33 = scalar_select %p30, %s31, %s32
      %p36 = pneg %p30
      %p37 = scmp.eq.s32.totalorder %s21, 1
      %p38 = por %p36, %p37
      %p39 = scmp.ne.s32.totalorder %s31, %s34
      %p40 = scmp.eq.s32.totalorder %s21, 0
      %p41 = por %p39, %p40
      %p42 = scmp.ne.s32.totalorder %s31, %s34
      %p43 = scmp.eq.s32.totalorder %s26, 1
      %p44 = por %p42, %p43
      %p45 = scmp.ne.s32.totalorder %s34, %s35
      %p46 = scmp.eq.s32.totalorder %s26, 0
      %p47 = por %p45, %p46
      %p48 = scmp.ne.s32.totalorder %s34, %s35
      %p49 = scmp.eq.s32.totalorder %s27, 1
      %p50 = por %p48, %p49
      %p52 = scmp.ne.s32.totalorder %s35, %s51
      %p53 = scmp.eq.s32.totalorder %s27, 0
      %p54 = por %p52, %p53
      %s56 = sadd.s32 %s55, 1
      %p59 = scmp.eq.s32.totalorder %s21, 1
      %p60 = scmp.ne.s32.totalorder %s55, %s57
      %p61 = scmp.eq.s32.totalorder %s21, 0
      %p62 = por %p60, %p61
      %p63 = scmp.ne.s32.totalorder %s55, %s57
      %p64 = scmp.eq.s32.totalorder %s26, 1
      %p65 = por %p63, %p64
      %p66 = scmp.ne.s32.totalorder %s57, %s58
      %p67 = scmp.eq.s32.totalorder %s26, 0
      %p68 = por %p66, %p67
      %p69 = scmp.ne.s32.totalorder %s57, %s58
      %p70 = scmp.eq.s32.totalorder %s27, 1
      %p71 = por %p69, %p70
      %p73 = scmp.ne.s32.totalorder %s58, %s72
      %p74 = scmp.eq.s32.totalorder %s27, 0
      %p75 = por %p73, %p74
      %s77 = sadd.s32 %s76, 1
      %p80 = scmp.eq.s32.totalorder %s21, 1
      %p81 = scmp.ne.s32.totalorder %s76, %s78
      %p82 = scmp.eq.s32.totalorder %s21, 0
      %p83 = por %p81, %p82
      %p84 = scmp.ne.s32.totalorder %s76, %s78
      %p85 = scmp.eq.s32.totalorder %s26, 1
      %p86 = por %p84, %p85
      %p87 = scmp.ne.s32.totalorder %s78, %s79
      %p88 = scmp.eq.s32.totalorder %s26, 0
      %p89 = por %p87, %p88
      %p90 = scmp.ne.s32.totalorder %s78, %s79
      %p91 = scmp.eq.s32.totalorder %s27, 1
      %p92 = por %p90, %p91
      %p94 = scmp.ne.s32.totalorder %s79, %s93
      %p95 = scmp.eq.s32.totalorder %s27, 0
      %p96 = por %p94, %p95
      %s98 = sadd.s32 %s97, 1
      %p101 = scmp.eq.s32.totalorder %s21, 1
      %p102 = scmp.ne.s32.totalorder %s97, %s99
      %p103 = scmp.eq.s32.totalorder %s21, 0
      %p104 = por %p102, %p103
      %p105 = scmp.ne.s32.totalorder %s97, %s99
      %p106 = scmp.eq.s32.totalorder %s26, 1
      %p107 = por %p105, %p106
      %p108 = scmp.ne.s32.totalorder %s99, %s100
      %p109 = scmp.eq.s32.totalorder %s26, 0
      %p110 = por %p108, %p109
      %p111 = scmp.ne.s32.totalorder %s99, %s100
      %p112 = scmp.eq.s32.totalorder %s27, 1
      %p113 = por %p111, %p112
      %p115 = scmp.ne.s32.totalorder %s100, %s114
      %p116 = scmp.eq.s32.totalorder %s27, 0
      %p117 = por %p115, %p116
      %s119 = sadd.s32 %s118, 1
      %p122 = scmp.eq.s32.totalorder %s21, 1
      %p123 = scmp.ne.s32.totalorder %s118, %s120
      %p124 = scmp.eq.s32.totalorder %s21, 0
      %p125 = por %p123, %p124
      %p126 = scmp.ne.s32.totalorder %s118, %s120
      %p127 = scmp.eq.s32.totalorder %s26, 1
      %p128 = por %p126, %p127
      %p129 = scmp.ne.s32.totalorder %s120, %s121
      %p130 = scmp.eq.s32.totalorder %s26, 0
      %p131 = por %p129, %p130
      %p132 = scmp.ne.s32.totalorder %s120, %s121
      %p133 = scmp.eq.s32.totalorder %s27, 1
      %p134 = por %p132, %p133
      %p136 = scmp.ne.s32.totalorder %s121, %s135
      %p137 = scmp.eq.s32.totalorder %s27, 0
      %p138 = por %p136, %p137
      %s140 = sadd.s32 %s139, 1
      %p143 = scmp.eq.s32.totalorder %s21, 1
      %p144 = scmp.ne.s32.totalorder %s139, %s141
      %p145 = scmp.eq.s32.totalorder %s21, 0
      %p146 = por %p144, %p145
      %p147 = scmp.ne.s32.totalorder %s139, %s141
      %p148 = scmp.eq.s32.totalorder %s26, 1
      %p149 = por %p147, %p148
      %p150 = scmp.ne.s32.totalorder %s141, %s142
      %p151 = scmp.eq.s32.totalorder %s26, 0
      %p152 = por %p150, %p151
      %p153 = scmp.ne.s32.totalorder %s141, %s142
      %p154 = scmp.eq.s32.totalorder %s27, 1
      %p155 = por %p153, %p154
      %p157 = scmp.ne.s32.totalorder %s142, %s156
      %p158 = scmp.eq.s32.totalorder %s27, 0
      %p159 = por %p157, %p158
      %s161 = sadd.s32 %s160, 1
      %p164 = scmp.eq.s32.totalorder %s21, 1
      %p165 = scmp.ne.s32.totalorder %s160, %s162
      %p166 = scmp.eq.s32.totalorder %s21, 0
      %p167 = por %p165, %p166
      %p168 = scmp.ne.s32.totalorder %s160, %s162
      %p169 = scmp.eq.s32.totalorder %s26, 1
      %p170 = por %p168, %p169
      %p171 = scmp.ne.s32.totalorder %s162, %s163
      %p172 = scmp.eq.s32.totalorder %s26, 0
      %p173 = por %p171, %p172
      %p174 = scmp.ne.s32.totalorder %s162, %s163
      %p175 = scmp.eq.s32.totalorder %s27, 1
      %p176 = por %p174, %p175
      %p178 = scmp.ne.s32.totalorder %s163, %s177
      %p179 = scmp.eq.s32.totalorder %s27, 0
      %p180 = por %p178, %p179
      %s181 = ssub.s32 %s21, %s28
      %p182 = scmp.eq.s32.totalorder %s181, 0
      %s184 = sadd.s32 %s183, 1
      %s185 = scalar_select %p182, %s183, %s184
      %p188 = pneg %p182
      %p189 = scmp.eq.s32.totalorder %s21, 1
      %p190 = por %p188, %p189
      %p191 = scmp.ne.s32.totalorder %s183, %s186
      %p192 = scmp.eq.s32.totalorder %s21, 0
      %p193 = por %p191, %p192
      %p194 = scmp.ne.s32.totalorder %s183, %s186
      %p195 = scmp.eq.s32.totalorder %s26, 1
      %p196 = por %p194, %p195
      %p197 = scmp.ne.s32.totalorder %s186, %s187
      %p198 = scmp.eq.s32.totalorder %s26, 0
      %p199 = por %p197, %p198
      %p200 = scmp.ne.s32.totalorder %s186, %s187
      %p201 = scmp.eq.s32.totalorder %s27, 1
      %p202 = por %p200, %p201
      %p204 = scmp.ne.s32.totalorder %s187, %s203
      %p205 = scmp.eq.s32.totalorder %s27, 0
      %p206 = por %p204, %p205
      %p207 = scmp.le.s32.totalorder 1, %s21
      %p208 = scmp.lt.s32.totalorder %s21, 3
      %p209 = pnand %p207, %p208
      %p210 = pneg %p209
      // Predicated region
      $region9: #{tpu_custom_call.1} parent=5 // pred_check
        _
      $region10: #{tpu_custom_call.1} parent=5 // pred_check_branch
        %212 = sbr.rel (%p209) target = $region12
      $region11: #{tpu_custom_call.1} parent=5 // pred_region
        %s213 = ssub.s32 %s21, 1
        // Predicated region
        $region13: #{tpu_custom_call.1} parent=11 // pred_check
          %p214 = pneg %p68
        $region14: #{tpu_custom_call.1} parent=11 // pred_check_branch
          %216 = sbr.rel (%p214) target = $region16
        $region15: #{tpu_custom_call.1} parent=11 // pred_region
          _
        $region16: #{tpu_custom_call.1} parent=11 // pred_fallthru
          _
        // Predicated region
        $region17: #{tpu_custom_call.1} parent=11 // pred_check
          %p217 = pneg %p89
        $region18: #{tpu_custom_call.1} parent=11 // pred_check_branch
          %219 = sbr.rel (%p217) target = $region20
        $region19: #{tpu_custom_call.1} parent=11 // pred_region
          _
        $region20: #{tpu_custom_call.1} parent=11 // pred_fallthru
          _
        // Predicated region
        $region21: #{tpu_custom_call.1} parent=11 // pred_check
          %p220 = pneg %p110
        $region22: #{tpu_custom_call.1} parent=11 // pred_check_branch
          %222 = sbr.rel (%p220) target = $region24
        $region23: #{tpu_custom_call.1} parent=11 // pred_region
          _
        $region24: #{tpu_custom_call.1} parent=11 // pred_fallthru
          _
        // Predicated region
        $region25: #{tpu_custom_call.1} parent=11 // pred_check
          %p223 = pneg %p131
        $region26: #{tpu_custom_call.1} parent=11 // pred_check_branch
          %225 = sbr.rel (%p223) target = $region28
        $region27: #{tpu_custom_call.1} parent=11 // pred_region
          _
        $region28: #{tpu_custom_call.1} parent=11 // pred_fallthru
          _
        // Predicated region
        $region29: #{tpu_custom_call.1} parent=11 // pred_check
          %p226 = pneg %p152
        $region30: #{tpu_custom_call.1} parent=11 // pred_check_branch
          %228 = sbr.rel (%p226) target = $region32
        $region31: #{tpu_custom_call.1} parent=11 // pred_region
          %s230 = ssub.s32 16384, 16384
          %231 = vsyncadd [#allocation7], %s230
          %s232 = sshll.u32 [#allocation6], 4
          %s233 = int_to_ptr.vmem [resolvable:$true] %s232
          %238 = dma.hbm_to_vmem [thread:$0]  %s5, 16384, %s233, [#allocation7], 256, 256, 16
        $region32: #{tpu_custom_call.1} parent=11 // pred_fallthru
          _
        // Predicated region
        $region33: #{tpu_custom_call.1} parent=11 // pred_check
          %p239 = pneg %p173
        $region34: #{tpu_custom_call.1} parent=11 // pred_check_branch
          %241 = sbr.rel (%p239) target = $region36
        $region35: #{tpu_custom_call.1} parent=11 // pred_region
          _
        $region36: #{tpu_custom_call.1} parent=11 // pred_fallthru
          _
      $region12: #{tpu_custom_call.1} parent=5 // pred_fallthru
        _
      %p242 = scmp.lt.s32.totalorder %s21, 2
      // Predicated region
      $region37: #{tpu_custom_call.1} parent=5 // pred_check
        %p243 = pneg %p242
      $region38: #{tpu_custom_call.1} parent=5 // pred_check_branch
        %245 = sbr.rel (%p243) target = $region40
      $region39: #{tpu_custom_call.1} parent=5 // pred_region
        // Predicated region
        $region41: #{tpu_custom_call.1} parent=39 // pred_check
          %p246 = pneg %p41
        $region42: #{tpu_custom_call.1} parent=39 // pred_check_branch
          %248 = sbr.rel (%p246) target = $region44
        $region43: #{tpu_custom_call.1} parent=39 // pred_region
          %s249 = sand.u32 %s31, 1
          %s250 = scalar_lea.sflag [#allocation4], %s249
          %s251 = sand.u32 %s31, 1
          %s252 = smul.addr %s251, 64
          %s253 = scalar_lea.vmem [#allocation3], %s252
          %s255 = ssub.s32 1024, 1024
          %256 = vsyncadd %s250, %s255
          %s257 = smul.addr %s21, 8
          %s258 = smul.addr %s257, 128
          %s259 = scalar_lea.hbm %s0, %s258
          %s260 = sshll.u32 %s253, 4
          %s261 = int_to_ptr.vmem [resolvable:$true] %s260
          %266 = dma.hbm_to_vmem [thread:$0]  %s259, 1024, %s261, %s250, 256, 256, 16
        $region44: #{tpu_custom_call.1} parent=39 // pred_fallthru
          _
      $region40: #{tpu_custom_call.1} parent=5 // pred_fallthru
        _
      %p267 = scmp.le.s32.totalorder 1, %s21
      %p268 = scmp.lt.s32.totalorder %s21, 3
      %p269 = pnand %p267, %p268
      %p270 = pneg %p269
      // Predicated region
      $region45: #{tpu_custom_call.1} parent=5 // pred_check
        _
      $region46: #{tpu_custom_call.1} parent=5 // pred_check_branch
        %272 = sbr.rel (%p269) target = $region48
      $region47: #{tpu_custom_call.1} parent=5 // pred_region
        %s273 = ssub.s32 %s21, 1
        %s274 = sand.u32 %s34, 1
        %s275 = scalar_lea.sflag [#allocation4], %s274
        %s276 = sand.u32 %s34, 1
        %s277 = smul.addr %s276, 64
        %s278 = scalar_lea.vmem [#allocation3], %s277
        // Predicated region
        $region49: #{tpu_custom_call.1} parent=47 // pred_check
          %p279 = pneg %p47
        $region50: #{tpu_custom_call.1} parent=47 // pred_check_branch
          %281 = sbr.rel (%p279) target = $region52
        $region51: #{tpu_custom_call.1} parent=47 // pred_region
          %282 = dma.done %s275, 1024
        $region52: #{tpu_custom_call.1} parent=47 // pred_fallthru
          _
        // Predicated region
        $region53: #{tpu_custom_call.1} parent=47 // pred_check
          %p283 = pneg %p152
        $region54: #{tpu_custom_call.1} parent=47 // pred_check_branch
          %285 = sbr.rel (%p283) target = $region56
        $region55: #{tpu_custom_call.1} parent=47 // pred_region
          %286 = dma.done [#allocation7], 16384
        $region56: #{tpu_custom_call.1} parent=47 // pred_fallthru
          _
        %s287 = sand.u32 %s34, 1
        %s288 = scalar_lea.sflag [#allocation4], %s287
        %s289 = sand.u32 %s34, 1
        %s290 = smul.addr %s289, 64
        %s291 = scalar_lea.vmem [#allocation3], %s290
        %p292 = pneg %p47
        %p293 = pneg %p44
        %p294 = pneg %p68
        %p295 = pneg %p65
        %p296 = pneg %p89
        %p297 = pneg %p86
        %p298 = pneg %p110
        %p299 = pneg %p107
        %p300 = pneg %p131
        %p301 = pneg %p128
        %p302 = pneg %p152
        %p303 = pneg %p149
        %p304 = pneg %p173
        %p305 = pneg %p170
        %p306 = pneg %p199
        %p307 = pneg %p196
        %s308 = sand.u32 %s186, 1
        %s309 = scalar_lea.sflag [#allocation5], %s308
        %s310 = sand.u32 %s186, 1
        %s311 = smul.addr %s310, 64
        %s312 = scalar_lea.vmem [#allocation8], %s311
        %v313 = vld [vmem:[%s278] sm:$0xff]
        %v314 = vld [vmem:[%s278 + $0x8] sm:$0xff]
        %v315 = vld [vmem:[%s278 + $0x10] sm:$0xff]
        %v316 = vld [vmem:[%s278 + $0x18] sm:$0xff]
        %v317 = vld [vmem:[%s278 + $0x20] sm:$0xff]
        %v318 = vld [vmem:[%s278 + $0x28] sm:$0xff]
        %v319 = vld [vmem:[%s278 + $0x30] sm:$0xff]
        %v320 = vld [vmem:[%s278 + $0x38] sm:$0xff]
        %v321 = vadd.f32 %v313, %v314
        %322 = vadd.xlane.f32.xlu0 %v321
        %v323 = vpop.xlane.xlu0 %322
        %v324 = vadd.f32 %v315, %v316
        %325 = vadd.xlane.f32.xlu0 %v324
        %v326 = vpop.xlane.xlu0 %325
        %v327 = vadd.f32 %v317, %v318
        %328 = vadd.xlane.f32.xlu0 %v327
        %v329 = vpop.xlane.xlu0 %328
        %v330 = vadd.f32 %v319, %v320
        %331 = vadd.xlane.f32.xlu0 %v330
        %v332 = vpop.xlane.xlu0 %331
        %v333 = vmul.f32 %v323, 0.00390625
        %v334 = vmul.f32 %v326, 0.00390625
        %v335 = vmul.f32 %v329, 0.00390625
        %v336 = vmul.f32 %v332, 0.00390625
        %v337 = vmax.f32 %v313, %v314
        %338 = vmax.xlane.f32.xlu0 %v337
        %v339 = vpop.xlane.xlu0 %338
        %v340 = vmax.f32 %v315, %v316
        %341 = vmax.xlane.f32.xlu0 %v340
        %v342 = vpop.xlane.xlu0 %341
        %v343 = vmax.f32 %v317, %v318
        %344 = vmax.xlane.f32.xlu0 %v343
        %v345 = vpop.xlane.xlu0 %344
        %v346 = vmax.f32 %v319, %v320
        %347 = vmax.xlane.f32.xlu0 %v346
        %v348 = vpop.xlane.xlu0 %347
        %vm349 = vcmask 7168
        %v350 = vsel %vm349, %v333, %v339
        %v351 = vsel %vm349, %v334, %v342
        %v352 = vsel %vm349, %v335, %v345
        %v353 = vsel %vm349, %v336, %v348
        %v354 = vld [vmem:[%s1] sm:$0x3]
        %v355 = vld [vmem:[%s2] sm:$0x3]
        %357 = vset.pattern.permute.xlu0 0
        %358 = vperm.xlu0 %357, %v355
        %v359 = vpop.permute.xlu0 %358
        %vm361 = vcmask 261120
        %v363 = vsel %vm361, %v354, 0
        %365 = vmatprep.subr.mxu0 0.0
        %366 = vmatpush1.msra.mxu0 0.0
        %367 = vmatprep.subr.mxu0 0.0
        %368 = vmatpush1.msra.mxu0 0.0
        %369 = vmatprep.subr.mxu0 0.0
        %370 = vmatpush1.msra.mxu0 0.0
        %371 = vmatprep.subr.mxu0 0.0
        %372 = vmatpush1.msra.mxu0 0.0
        %373 = vmatprep.subr.mxu0 0.0
        %374 = vmatpush1.msra.mxu0 0.0
        %375 = vmatprep.subr.mxu0 0.0
        %376 = vmatpush1.msra.mxu0 0.0
        %377 = vmatprep.subr.mxu0 0.0
        %378 = vmatpush1.msra.mxu0 0.0
        %379 = vmatprep.subr.mxu0 0.0
        %380 = vmatpush1.msra.mxu0 0.0
        %381 = vmatprep.subr.mxu0 0.0
        %382 = vmatpush1.msra.mxu0 0.0
        %383 = vmatprep.subr.mxu0 0.0
        %384 = vmatpush1.msra.mxu0 0.0
        %385 = vmatprep.subr.mxu0 0.0
        %386 = vmatpush1.msra.mxu0 0.0
        %387 = vmatprep.subr.mxu0 0.0
        %388 = vmatpush1.msra.mxu0 0.0
        %389 = vmatprep.subr.mxu0 0.0
        %390 = vmatpush1.msra.mxu0 %v353
        %391 = vmatprep.subr.mxu0 0.0
        %392 = vmatpush1.msra.mxu0 %v352
        %393 = vmatprep.subr.mxu0 0.0
        %394 = vmatpush1.msra.mxu0 %v351
        %395 = vmatprep.subr.mxu0 0.0
        %396 = vmatpush1.msra.mxu0 %v350
        %397 = vmatprep.subr.mxu0 0.0
        %398 = vmatpush2.msra.mxu0 0.0
        %399 = vmatprep.subr.mxu0 0.0
        %400 = vmatpush2.msra.mxu0 0.0
        %401 = vmatprep.subr.mxu0 0.0
        %402 = vmatpush2.msra.mxu0 0.0
        %403 = vmatprep.subr.mxu0 0.0
        %404 = vmatpush2.msra.mxu0 0.0
        %405 = vmatprep.subr.mxu0 0.0
        %406 = vmatpush2.msra.mxu0 0.0
        %407 = vmatprep.subr.mxu0 0.0
        %408 = vmatpush2.msra.mxu0 0.0
        %409 = vmatprep.subr.mxu0 0.0
        %410 = vmatpush2.msra.mxu0 0.0
        %411 = vmatprep.subr.mxu0 0.0
        %412 = vmatpush2.msra.mxu0 0.0
        %413 = vmatprep.subr.mxu0 0.0
        %414 = vmatpush2.msra.mxu0 0.0
        %415 = vmatprep.subr.mxu0 0.0
        %416 = vmatpush2.msra.mxu0 0.0
        %417 = vmatprep.subr.mxu0 0.0
        %418 = vmatpush2.msra.mxu0 0.0
        %419 = vmatprep.subr.mxu0 0.0
        %420 = vmatpush2.msra.mxu0 0.0
        %421 = vmatprep.subr.mxu0 0.0
        %422 = vmatpush2.msra.mxu0 0.0
        %423 = vmatprep.subr.mxu0 0.0
        %424 = vmatpush2.msra.mxu0 0.0
        %425 = vmatprep.subr.mxu0 0.0
        %426 = vmatpush2.msra.mxu0 0.0
        %427 = vmatprep.subr.mxu0 0.0
        %428 = vmatpush2.msra.mxu0 0.0
        %429 = vmatprep.mubr.f32.mxu0 0.0
        %430 = vmatmul.mubr.f32.gmra.mxu0 %v363
        %v431 = vpop.f32.mrf.mxu0
        %v432 = vadd.f32 %v359, %v431
        %v433 = vpop.f32.mrf.mxu0
        %434 = vdwg.mxu0
        %v435 = vmax.f32 %v432, 0.0
        %v436 = vld [vmem:[%s3] sm:$0xff]
        %v437 = vld [vmem:[%s3 + $0x8] sm:$0xff]
        %v438 = vld [vmem:[%s3 + $0x10] sm:$0xff]
        %v439 = vld [vmem:[%s3 + $0x18] sm:$0xff]
        %vm440 = vcmask 15360
        %v442 = vsel %vm440, %v436, 0
        %v445 = vsel %vm440, %v437, 0
        %v448 = vsel %vm440, %v438, 0
        %v451 = vsel %vm440, %v439, 0
        %vm453 = vcmask 1041408
        %v455 = vsel %vm453, %v435, 0
        %457 = vmatprep.subr.mxu0 0.0
        %458 = vmatpush1.msra.mxu0 0.0
        %459 = vmatprep.subr.mxu0 0.0
        %460 = vmatpush1.msra.mxu0 0.0
        %461 = vmatprep.subr.mxu0 0.0
        %462 = vmatpush1.msra.mxu0 0.0
        %463 = vmatprep.subr.mxu0 0.0
        %464 = vmatpush1.msra.mxu0 0.0
        %465 = vmatprep.subr.mxu0 0.0
        %466 = vmatpush1.msra.mxu0 0.0
        %467 = vmatprep.subr.mxu0 0.0
        %468 = vmatpush1.msra.mxu0 0.0
        %469 = vmatprep.subr.mxu0 0.0
        %470 = vmatpush1.msra.mxu0 0.0
        %471 = vmatprep.subr.mxu0 0.0
        %472 = vmatpush1.msra.mxu0 0.0
        %473 = vmatprep.subr.mxu0 0.0
        %474 = vmatpush1.msra.mxu0 0.0
        %475 = vmatprep.subr.mxu0 0.0
        %476 = vmatpush1.msra.mxu0 0.0
        %477 = vmatprep.subr.mxu0 0.0
        %478 = vmatpush1.msra.mxu0 0.0
        %479 = vmatprep.subr.mxu0 0.0
        %480 = vmatpush1.msra.mxu0 0.0
        %481 = vmatprep.subr.mxu0 0.0
        %482 = vmatpush1.msra.mxu0 0.0
        %483 = vmatprep.subr.mxu0 0.0
        %484 = vmatpush1.msra.mxu0 0.0
        %485 = vmatprep.subr.mxu0 0.0
        %486 = vmatpush1.msra.mxu0 0.0
        %487 = vmatprep.subr.mxu0 0.0
        %488 = vmatpush1.msra.mxu0 %v455
        %489 = vmatprep.subr.mxu0 0.0
        %490 = vmatpush2.msra.mxu0 0.0
        %491 = vmatprep.subr.mxu0 0.0
        %492 = vmatpush2.msra.mxu0 0.0
        %493 = vmatprep.subr.mxu0 0.0
        %494 = vmatpush2.msra.mxu0 0.0
        %495 = vmatprep.subr.mxu0 0.0
        %496 = vmatpush2.msra.mxu0 0.0
        %497 = vmatprep.subr.mxu0 0.0
        %498 = vmatpush2.msra.mxu0 0.0
        %499 = vmatprep.subr.mxu0 0.0
        %500 = vmatpush2.msra.mxu0 0.0
        %501 = vmatprep.subr.mxu0 0.0
        %502 = vmatpush2.msra.mxu0 0.0
        %503 = vmatprep.subr.mxu0 0.0
        %504 = vmatpush2.msra.mxu0 0.0
        %505 = vmatprep.subr.mxu0 0.0
        %506 = vmatpush2.msra.mxu0 0.0
        %507 = vmatprep.subr.mxu0 0.0
        %508 = vmatpush2.msra.mxu0 0.0
        %509 = vmatprep.subr.mxu0 0.0
        %510 = vmatpush2.msra.mxu0 0.0
        %511 = vmatprep.subr.mxu0 0.0
        %512 = vmatpush2.msra.mxu0 0.0
        %513 = vmatprep.subr.mxu0 0.0
        %514 = vmatpush2.msra.mxu0 0.0
        %515 = vmatprep.subr.mxu0 0.0
        %516 = vmatpush2.msra.mxu0 0.0
        %517 = vmatprep.subr.mxu0 0.0
        %518 = vmatpush2.msra.mxu0 0.0
        %519 = vmatprep.subr.mxu0 0.0
        %520 = vmatpush2.msra.mxu0 0.0
        %521 = vmatprep.mubr.f32.mxu0 0.0
        %522 = vmatmul.mubr.f32.gmra.mxu0 %v442
        %v523 = vpop.f32.mrf.mxu0
        %v524 = vadd.f32 0.0, %v523
        %v525 = vpop.f32.mrf.mxu0
        %526 = vmatprep.mubr.f32.mxu0 0.0
        %527 = vmatmul.mubr.f32.gmra.mxu0 %v445
        %v528 = vpop.f32.mrf.mxu0
        %v529 = vadd.f32 0.0, %v528
        %v530 = vpop.f32.mrf.mxu0
        %531 = vmatprep.mubr.f32.mxu0 0.0
        %532 = vmatmul.mubr.f32.gmra.mxu0 %v448
        %v533 = vpop.f32.mrf.mxu0
        %v534 = vadd.f32 0.0, %v533
        %v535 = vpop.f32.mrf.mxu0
        %536 = vmatprep.mubr.f32.mxu0 0.0
        %537 = vmatmul.mubr.f32.gmra.mxu0 %v451
        %v538 = vpop.f32.mrf.mxu0
        %v539 = vadd.f32 0.0, %v538
        %v540 = vpop.f32.mrf.mxu0
        %541 = vdwg.mxu0
        %546 = vrot.lane.b32.xlu0 %v524, 127
        %v547 = vpop.permute.xlu0 %546
        %548 = vrot.lane.b32.xlu0 %v529, 127
        %v549 = vpop.permute.xlu0 %548
        %550 = vrot.lane.b32.xlu0 %v534, 127
        %v551 = vpop.permute.xlu0 %550
        %552 = vrot.lane.b32.xlu0 %v539, 127
        %v553 = vpop.permute.xlu0 %552
        %v558 = vadd.f32 %v524, %v547
        %v559 = vadd.f32 %v529, %v549
        %v560 = vadd.f32 %v534, %v551
        %v561 = vadd.f32 %v539, %v553
        %v562 = vld [vmem:[%s4] sm:$0xff]
        %v563 = vld [vmem:[%s4 + $0x8] sm:$0xff]
        %v564 = vld [vmem:[%s4 + $0x10] sm:$0xff]
        %v565 = vld [vmem:[%s4 + $0x18] sm:$0xff]
        %v566 = vmul.f32 %v562, 2.0
        %v567 = vmul.f32 %v563, 2.0
        %v568 = vmul.f32 %v564, 2.0
        %v569 = vmul.f32 %v565, 2.0
        %v570 = vadd.f32 %v558, %v566
        %v571 = vadd.f32 %v559, %v567
        %v572 = vadd.f32 %v560, %v568
        %v573 = vadd.f32 %v561, %v569
        %v574 = vxor.u32 %v570, 2147483648
        %v575 = vxor.u32 %v571, 2147483648
        %v576 = vxor.u32 %v572, 2147483648
        %v577 = vxor.u32 %v573, 2147483648
        %v578 = vmul.f32 %v574, 1.442695
        %v579 = vpow.pop %v578
        %v580 = vmul.f32 %v575, 1.442695
        %v581 = vpow.pop %v580
        %v582 = vmul.f32 %v576, 1.442695
        %v583 = vpow.pop %v582
        %v584 = vmul.f32 %v577, 1.442695
        %v585 = vpow.pop %v584
        %v586 = vadd.f32 %v579, 1.0
        %v587 = vadd.f32 %v581, 1.0
        %v588 = vadd.f32 %v583, 1.0
        %v589 = vadd.f32 %v585, 1.0
        %v590 = vrcp.pop %v586
        %v591 = vmul.f32 1.0, %v590
        %v592 = vrcp.pop %v587
        %v593 = vmul.f32 1.0, %v592
        %v594 = vrcp.pop %v588
        %v595 = vmul.f32 1.0, %v594
        %v596 = vrcp.pop %v589
        %v597 = vmul.f32 1.0, %v596
        %599 = vset.pattern.permute.xlu0 0
        %600 = vperm.xlu0 %599, %v591
        %v601 = vpop.permute.xlu0 %600
        %604 = vset.pattern.permute.xlu0 0
        %605 = vperm.xlu0 %604, %v593
        %v606 = vpop.permute.xlu0 %605
        %609 = vset.pattern.permute.xlu0 0
        %610 = vperm.xlu0 %609, %v595
        %v611 = vpop.permute.xlu0 %610
        %614 = vset.pattern.permute.xlu0 0
        %615 = vperm.xlu0 %614, %v597
        %v616 = vpop.permute.xlu0 %615
        %v618 = vmul.f32 %v313, %v601
        %v619 = vmul.f32 %v314, %v601
        %v620 = vmul.f32 %v315, %v606
        %v621 = vmul.f32 %v316, %v606
        %v622 = vmul.f32 %v317, %v611
        %v623 = vmul.f32 %v318, %v611
        %v624 = vmul.f32 %v319, %v616
        %v625 = vmul.f32 %v320, %v616
        %v626 = vmax.f32 %v618, %v622
        %v627 = vmax.f32 %v620, %v624
        %v628 = vmax.f32 %v626, %v627
        %v629 = vrot.slane %v628, 4
        %v630 = vmax.f32 %v628, %v629
        %v631 = vrot.slane %v630, 2
        %v632 = vmax.f32 %v630, %v631
        %v633 = vrot.slane %v632, 1
        %v634 = vmax.f32 %v632, %v633
        %v635 = vmax.f32 %v619, %v623
        %v636 = vmax.f32 %v621, %v625
        %v637 = vmax.f32 %v635, %v636
        %v638 = vrot.slane %v637, 4
        %v639 = vmax.f32 %v637, %v638
        %v640 = vrot.slane %v639, 2
        %v641 = vmax.f32 %v639, %v640
        %v642 = vrot.slane %v641, 1
        %v643 = vmax.f32 %v641, %v642
        %v644 = vadd.f32 %v618, %v620
        %v645 = vadd.f32 %v644, %v622
        %v646 = vadd.f32 %v645, %v624
        %v647 = vrot.slane %v646, 4
        %v648 = vadd.f32 %v646, %v647
        %v649 = vrot.slane %v648, 2
        %v650 = vadd.f32 %v648, %v649
        %v651 = vrot.slane %v650, 1
        %v652 = vadd.f32 %v650, %v651
        %v653 = vadd.f32 %v619, %v621
        %v654 = vadd.f32 %v653, %v623
        %v655 = vadd.f32 %v654, %v625
        %v656 = vrot.slane %v655, 4
        %v657 = vadd.f32 %v655, %v656
        %v658 = vrot.slane %v657, 2
        %v659 = vadd.f32 %v657, %v658
        %v660 = vrot.slane %v659, 1
        %v661 = vadd.f32 %v659, %v660
        %v662 = vmul.f32 %v652, 0.03125
        %v663 = vmul.f32 %v661, 0.03125
        %v664 = vld [vmem:[#allocation6] sm:$0xff]
        %v665 = vld [vmem:[#allocation6 + $0x8] sm:$0xff]
        %v666 = vld [vmem:[#allocation6 + $0x10] sm:$0xff]
        %v667 = vld [vmem:[#allocation6 + $0x18] sm:$0xff]
        %v668 = vld [vmem:[#allocation6 + $0x20] sm:$0xff]
        %v669 = vld [vmem:[#allocation6 + $0x28] sm:$0xff]
        %v670 = vld [vmem:[#allocation6 + $0x30] sm:$0xff]
        %v671 = vld [vmem:[#allocation6 + $0x38] sm:$0xff]
        %v672 = vld [vmem:[#allocation6 + $0x40] sm:$0xff]
        %v673 = vld [vmem:[#allocation6 + $0x48] sm:$0xff]
        %v674 = vld [vmem:[#allocation6 + $0x50] sm:$0xff]
        %v675 = vld [vmem:[#allocation6 + $0x58] sm:$0xff]
        %v676 = vld [vmem:[#allocation6 + $0x60] sm:$0xff]
        %v677 = vld [vmem:[#allocation6 + $0x68] sm:$0xff]
        %v678 = vld [vmem:[#allocation6 + $0x70] sm:$0xff]
        %v679 = vld [vmem:[#allocation6 + $0x78] sm:$0xff]
        %v680 = vld [vmem:[#allocation6 + $0x80] sm:$0xff]
        %v681 = vld [vmem:[#allocation6 + $0x88] sm:$0xff]
        %v682 = vld [vmem:[#allocation6 + $0x90] sm:$0xff]
        %v683 = vld [vmem:[#allocation6 + $0x98] sm:$0xff]
        %v684 = vld [vmem:[#allocation6 + $0xa0] sm:$0xff]
        %v685 = vld [vmem:[#allocation6 + $0xa8] sm:$0xff]
        %v686 = vld [vmem:[#allocation6 + $0xb0] sm:$0xff]
        %v687 = vld [vmem:[#allocation6 + $0xb8] sm:$0xff]
        %v688 = vld [vmem:[#allocation6 + $0xc0] sm:$0xff]
        %v689 = vld [vmem:[#allocation6 + $0xc8] sm:$0xff]
        %v690 = vld [vmem:[#allocation6 + $0xd0] sm:$0xff]
        %v691 = vld [vmem:[#allocation6 + $0xd8] sm:$0xff]
        %v692 = vld [vmem:[#allocation6 + $0xe0] sm:$0xff]
        %v693 = vld [vmem:[#allocation6 + $0xe8] sm:$0xff]
        %v694 = vld [vmem:[#allocation6 + $0xf0] sm:$0xff]
        %v695 = vld [vmem:[#allocation6 + $0xf8] sm:$0xff]
        %v696 = vld [vmem:[#allocation6 + $0x100] sm:$0xff]
        %v697 = vld [vmem:[#allocation6 + $0x108] sm:$0xff]
        %v698 = vld [vmem:[#allocation6 + $0x110] sm:$0xff]
        %v699 = vld [vmem:[#allocation6 + $0x118] sm:$0xff]
        %v700 = vld [vmem:[#allocation6 + $0x120] sm:$0xff]
        %v701 = vld [vmem:[#allocation6 + $0x128] sm:$0xff]
        %v702 = vld [vmem:[#allocation6 + $0x130] sm:$0xff]
        %v703 = vld [vmem:[#allocation6 + $0x138] sm:$0xff]
        %v704 = vld [vmem:[#allocation6 + $0x140] sm:$0xff]
        %v705 = vld [vmem:[#allocation6 + $0x148] sm:$0xff]
        %v706 = vld [vmem:[#allocation6 + $0x150] sm:$0xff]
        %v707 = vld [vmem:[#allocation6 + $0x158] sm:$0xff]
        %v708 = vld [vmem:[#allocation6 + $0x160] sm:$0xff]
        %v709 = vld [vmem:[#allocation6 + $0x168] sm:$0xff]
        %v710 = vld [vmem:[#allocation6 + $0x170] sm:$0xff]
        %v711 = vld [vmem:[#allocation6 + $0x178] sm:$0xff]
        %v712 = vld [vmem:[#allocation6 + $0x180] sm:$0xff]
        %v713 = vld [vmem:[#allocation6 + $0x188] sm:$0xff]
        %v714 = vld [vmem:[#allocation6 + $0x190] sm:$0xff]
        %v715 = vld [vmem:[#allocation6 + $0x198] sm:$0xff]
        %v716 = vld [vmem:[#allocation6 + $0x1a0] sm:$0xff]
        %v717 = vld [vmem:[#allocation6 + $0x1a8] sm:$0xff]
        %v718 = vld [vmem:[#allocation6 + $0x1b0] sm:$0xff]
        %v719 = vld [vmem:[#allocation6 + $0x1b8] sm:$0xff]
        %v720 = vld [vmem:[#allocation6 + $0x1c0] sm:$0xff]
        %v721 = vld [vmem:[#allocation6 + $0x1c8] sm:$0xff]
        %v722 = vld [vmem:[#allocation6 + $0x1d0] sm:$0xff]
        %v723 = vld [vmem:[#allocation6 + $0x1d8] sm:$0xff]
        %v724 = vld [vmem:[#allocation6 + $0x1e0] sm:$0xff]
        %v725 = vld [vmem:[#allocation6 + $0x1e8] sm:$0xff]
        %v726 = vld [vmem:[#allocation6 + $0x1f0] sm:$0xff]
        %v727 = vld [vmem:[#allocation6 + $0x1f8] sm:$0xff]
        %v728 = vld [vmem:[#allocation6 + $0x200] sm:$0xff]
        %v729 = vld [vmem:[#allocation6 + $0x208] sm:$0xff]
        %v730 = vld [vmem:[#allocation6 + $0x210] sm:$0xff]
        %v731 = vld [vmem:[#allocation6 + $0x218] sm:$0xff]
        %v732 = vld [vmem:[#allocation6 + $0x220] sm:$0xff]
        %v733 = vld [vmem:[#allocation6 + $0x228] sm:$0xff]
        %v734 = vld [vmem:[#allocation6 + $0x230] sm:$0xff]
        %v735 = vld [vmem:[#allocation6 + $0x238] sm:$0xff]
        %v736 = vld [vmem:[#allocation6 + $0x240] sm:$0xff]
        %v737 = vld [vmem:[#allocation6 + $0x248] sm:$0xff]
        %v738 = vld [vmem:[#allocation6 + $0x250] sm:$0xff]
        %v739 = vld [vmem:[#allocation6 + $0x258] sm:$0xff]
        %v740 = vld [vmem:[#allocation6 + $0x260] sm:$0xff]
        %v741 = vld [vmem:[#allocation6 + $0x268] sm:$0xff]
        %v742 = vld [vmem:[#allocation6 + $0x270] sm:$0xff]
        %v743 = vld [vmem:[#allocation6 + $0x278] sm:$0xff]
        %v744 = vld [vmem:[#allocation6 + $0x280] sm:$0xff]
        %v745 = vld [vmem:[#allocation6 + $0x288] sm:$0xff]
        %v746 = vld [vmem:[#allocation6 + $0x290] sm:$0xff]
        %v747 = vld [vmem:[#allocation6 + $0x298] sm:$0xff]
        %v748 = vld [vmem:[#allocation6 + $0x2a0] sm:$0xff]
        %v749 = vld [vmem:[#allocation6 + $0x2a8] sm:$0xff]
        %v750 = vld [vmem:[#allocation6 + $0x2b0] sm:$0xff]
        %v751 = vld [vmem:[#allocation6 + $0x2b8] sm:$0xff]
        %v752 = vld [vmem:[#allocation6 + $0x2c0] sm:$0xff]
        %v753 = vld [vmem:[#allocation6 + $0x2c8] sm:$0xff]
        %v754 = vld [vmem:[#allocation6 + $0x2d0] sm:$0xff]
        %v755 = vld [vmem:[#allocation6 + $0x2d8] sm:$0xff]
        %v756 = vld [vmem:[#allocation6 + $0x2e0] sm:$0xff]
        %v757 = vld [vmem:[#allocation6 + $0x2e8] sm:$0xff]
        %v758 = vld [vmem:[#allocation6 + $0x2f0] sm:$0xff]
        %v759 = vld [vmem:[#allocation6 + $0x2f8] sm:$0xff]
        %v760 = vld [vmem:[#allocation6 + $0x300] sm:$0xff]
        %v761 = vld [vmem:[#allocation6 + $0x308] sm:$0xff]
        %v762 = vld [vmem:[#allocation6 + $0x310] sm:$0xff]
        %v763 = vld [vmem:[#allocation6 + $0x318] sm:$0xff]
        %v764 = vld [vmem:[#allocation6 + $0x320] sm:$0xff]
        %v765 = vld [vmem:[#allocation6 + $0x328] sm:$0xff]
        %v766 = vld [vmem:[#allocation6 + $0x330] sm:$0xff]
        %v767 = vld [vmem:[#allocation6 + $0x338] sm:$0xff]
        %v768 = vld [vmem:[#allocation6 + $0x340] sm:$0xff]
        %v769 = vld [vmem:[#allocation6 + $0x348] sm:$0xff]
        %v770 = vld [vmem:[#allocation6 + $0x350] sm:$0xff]
        %v771 = vld [vmem:[#allocation6 + $0x358] sm:$0xff]
        %v772 = vld [vmem:[#allocation6 + $0x360] sm:$0xff]
        %v773 = vld [vmem:[#allocation6 + $0x368] sm:$0xff]
        %v774 = vld [vmem:[#allocation6 + $0x370] sm:$0xff]
        %v775 = vld [vmem:[#allocation6 + $0x378] sm:$0xff]
        %v776 = vld [vmem:[#allocation6 + $0x380] sm:$0xff]
        %v777 = vld [vmem:[#allocation6 + $0x388] sm:$0xff]
        %v778 = vld [vmem:[#allocation6 + $0x390] sm:$0xff]
        %v779 = vld [vmem:[#allocation6 + $0x398] sm:$0xff]
        %v780 = vld [vmem:[#allocation6 + $0x3a0] sm:$0xff]
        %v781 = vld [vmem:[#allocation6 + $0x3a8] sm:$0xff]
        %v782 = vld [vmem:[#allocation6 + $0x3b0] sm:$0xff]
        %v783 = vld [vmem:[#allocation6 + $0x3b8] sm:$0xff]
        %v784 = vld [vmem:[#allocation6 + $0x3c0] sm:$0xff]
        %v785 = vld [vmem:[#allocation6 + $0x3c8] sm:$0xff]
        %v786 = vld [vmem:[#allocation6 + $0x3d0] sm:$0xff]
        %v787 = vld [vmem:[#allocation6 + $0x3d8] sm:$0xff]
        %v788 = vld [vmem:[#allocation6 + $0x3e0] sm:$0xff]
        %v789 = vld [vmem:[#allocation6 + $0x3e8] sm:$0xff]
        %v790 = vld [vmem:[#allocation6 + $0x3f0] sm:$0xff]
        %v791 = vld [vmem:[#allocation6 + $0x3f8] sm:$0xff]
        %s792 = sld [smem:[#allocation2]]
        %v793 = vstv %s792
        %794 = vmatprep.subr.mxu0 %v695
        %795 = vmatpush1.msra.mxu0 %v694
        %796 = vmatprep.subr.mxu0 %v693
        %797 = vmatpush1.msra.mxu0 %v692
        %798 = vmatprep.subr.mxu0 %v691
        %799 = vmatpush1.msra.mxu0 %v690
        %800 = vmatprep.subr.mxu0 %v689
        %801 = vmatpush1.msra.mxu0 %v688
        %802 = vmatprep.subr.mxu0 %v687
        %803 = vmatpush1.msra.mxu0 %v686
        %804 = vmatprep.subr.mxu0 %v685
        %805 = vmatpush1.msra.mxu0 %v684
        %806 = vmatprep.subr.mxu0 %v683
        %807 = vmatpush1.msra.mxu0 %v682
        %808 = vmatprep.subr.mxu0 %v681
        %809 = vmatpush1.msra.mxu0 %v680
        %810 = vmatprep.subr.mxu0 %v679
        %811 = vmatpush1.msra.mxu0 %v678
        %812 = vmatprep.subr.mxu0 %v677
        %813 = vmatpush1.msra.mxu0 %v676
        %814 = vmatprep.subr.mxu0 %v675
        %815 = vmatpush1.msra.mxu0 %v674
        %816 = vmatprep.subr.mxu0 %v673
        %817 = vmatpush1.msra.mxu0 %v672
        %818 = vmatprep.subr.mxu0 %v671
        %819 = vmatpush1.msra.mxu0 %v670
        %820 = vmatprep.subr.mxu0 %v669
        %821 = vmatpush1.msra.mxu0 %v668
        %822 = vmatprep.subr.mxu0 %v667
        %823 = vmatpush1.msra.mxu0 %v666
        %824 = vmatprep.subr.mxu0 %v665
        %825 = vmatpush1.msra.mxu0 %v664
        %826 = vmatprep.subr.mxu0 %v727
        %827 = vmatpush2.msra.mxu0 %v726
        %828 = vmatprep.subr.mxu0 %v725
        %829 = vmatpush2.msra.mxu0 %v724
        %830 = vmatprep.subr.mxu0 %v723
        %831 = vmatpush2.msra.mxu0 %v722
        %832 = vmatprep.subr.mxu0 %v721
        %833 = vmatpush2.msra.mxu0 %v720
        %834 = vmatprep.subr.mxu0 %v719
        %835 = vmatpush2.msra.mxu0 %v718
        %836 = vmatprep.subr.mxu0 %v717
        %837 = vmatpush2.msra.mxu0 %v716
        %838 = vmatprep.subr.mxu0 %v715
        %839 = vmatpush2.msra.mxu0 %v714
        %840 = vmatprep.subr.mxu0 %v713
        %841 = vmatpush2.msra.mxu0 %v712
        %842 = vmatprep.subr.mxu0 %v711
        %843 = vmatpush2.msra.mxu0 %v710
        %844 = vmatprep.subr.mxu0 %v709
        %845 = vmatpush2.msra.mxu0 %v708
        %846 = vmatprep.subr.mxu0 %v707
        %847 = vmatpush2.msra.mxu0 %v706
        %848 = vmatprep.subr.mxu0 %v705
        %849 = vmatpush2.msra.mxu0 %v704
        %850 = vmatprep.subr.mxu0 %v703
        %851 = vmatpush2.msra.mxu0 %v702
        %852 = vmatprep.subr.mxu0 %v701
        %853 = vmatpush2.msra.mxu0 %v700
        %854 = vmatprep.subr.mxu0 %v699
        %855 = vmatpush2.msra.mxu0 %v698
        %856 = vmatprep.subr.mxu0 %v697
        %857 = vmatpush2.msra.mxu0 %v696
        %858 = vmatprep.mubr.f32.mxu0 %v643
        %859 = vmatmul.mubr.f32.gmra.mxu0 %v634
        %v860 = vpop.f32.mrf.mxu0
        %v861 = vadd.f32 %v793, %v860
        %v862 = vpop.f32.mrf.mxu0
        %v863 = vadd.f32 %v793, %v862
        %864 = vdwg.mxu0
        %865 = vmatprep.subr.mxu0 %v759
        %866 = vmatpush1.msra.mxu0 %v758
        %867 = vmatprep.subr.mxu0 %v757
        %868 = vmatpush1.msra.mxu0 %v756
        %869 = vmatprep.subr.mxu0 %v755
        %870 = vmatpush1.msra.mxu0 %v754
        %871 = vmatprep.subr.mxu0 %v753
        %872 = vmatpush1.msra.mxu0 %v752
        %873 = vmatprep.subr.mxu0 %v751
        %874 = vmatpush1.msra.mxu0 %v750
        %875 = vmatprep.subr.mxu0 %v749
        %876 = vmatpush1.msra.mxu0 %v748
        %877 = vmatprep.subr.mxu0 %v747
        %878 = vmatpush1.msra.mxu0 %v746
        %879 = vmatprep.subr.mxu0 %v745
        %880 = vmatpush1.msra.mxu0 %v744
        %881 = vmatprep.subr.mxu0 %v743
        %882 = vmatpush1.msra.mxu0 %v742
        %883 = vmatprep.subr.mxu0 %v741
        %884 = vmatpush1.msra.mxu0 %v740
        %885 = vmatprep.subr.mxu0 %v739
        %886 = vmatpush1.msra.mxu0 %v738
        %887 = vmatprep.subr.mxu0 %v737
        %888 = vmatpush1.msra.mxu0 %v736
        %889 = vmatprep.subr.mxu0 %v735
        %890 = vmatpush1.msra.mxu0 %v734
        %891 = vmatprep.subr.mxu0 %v733
        %892 = vmatpush1.msra.mxu0 %v732
        %893 = vmatprep.subr.mxu0 %v731
        %894 = vmatpush1.msra.mxu0 %v730
        %895 = vmatprep.subr.mxu0 %v729
        %896 = vmatpush1.msra.mxu0 %v728
        %897 = vmatprep.subr.mxu0 %v791
        %898 = vmatpush2.msra.mxu0 %v790
        %899 = vmatprep.subr.mxu0 %v789
        %900 = vmatpush2.msra.mxu0 %v788
        %901 = vmatprep.subr.mxu0 %v787
        %902 = vmatpush2.msra.mxu0 %v786
        %903 = vmatprep.subr.mxu0 %v785
        %904 = vmatpush2.msra.mxu0 %v784
        %905 = vmatprep.subr.mxu0 %v783
        %906 = vmatpush2.msra.mxu0 %v782
        %907 = vmatprep.subr.mxu0 %v781
        %908 = vmatpush2.msra.mxu0 %v780
        %909 = vmatprep.subr.mxu0 %v779
        %910 = vmatpush2.msra.mxu0 %v778
        %911 = vmatprep.subr.mxu0 %v777
        %912 = vmatpush2.msra.mxu0 %v776
        %913 = vmatprep.subr.mxu0 %v775
        %914 = vmatpush2.msra.mxu0 %v774
        %915 = vmatprep.subr.mxu0 %v773
        %916 = vmatpush2.msra.mxu0 %v772
        %917 = vmatprep.subr.mxu0 %v771
        %918 = vmatpush2.msra.mxu0 %v770
        %919 = vmatprep.subr.mxu0 %v769
        %920 = vmatpush2.msra.mxu0 %v768
        %921 = vmatprep.subr.mxu0 %v767
        %922 = vmatpush2.msra.mxu0 %v766
        %923 = vmatprep.subr.mxu0 %v765
        %924 = vmatpush2.msra.mxu0 %v764
        %925 = vmatprep.subr.mxu0 %v763
        %926 = vmatpush2.msra.mxu0 %v762
        %927 = vmatprep.subr.mxu0 %v761
        %928 = vmatpush2.msra.mxu0 %v760
        %929 = vmatprep.mubr.f32.mxu0 %v663
        %930 = vmatmul.mubr.f32.gmra.mxu0 %v662
        %v931 = vpop.f32.mrf.mxu0
        %v932 = vadd.f32 %v861, %v931
        %v933 = vpop.f32.mrf.mxu0
        %v934 = vadd.f32 %v863, %v933
        %935 = vdwg.mxu0
        %v936 = vmax.f32 %v932, 0.0
        %v937 = vmax.f32 %v934, 0.0
        %v938 = vxor.u32 %v936, 2147483648
        %v939 = vxor.u32 %v937, 2147483648
        %v940 = vmul.f32 %v938, 1.442695
        %v941 = vpow.pop %v940
        %v942 = vmul.f32 %v939, 1.442695
        %v943 = vpow.pop %v942
        %v944 = vadd.f32 %v941, 1.0
        %v945 = vadd.f32 %v943, 1.0
        %v946 = vrcp.pop %v944
        %v947 = vmul.f32 1.0, %v946
        %v948 = vrcp.pop %v945
        %v949 = vmul.f32 1.0, %v948
        %v950 = vlaneseq
        %v951 = vshrl.u32 %v950, 7
        %v952 = vsub.s32 0, %v951
        %v953 = vrot.slane %v947, %v952
        %v954 = vlaneseq
        %v955 = vshrl.u32 %v954, 7
        %v956 = vsub.s32 0, %v955
        %v957 = vrot.slane %v949, %v956
        %v958 = vmul.f32 %v618, %v953
        %v959 = vmul.f32 %v619, %v957
        %v960 = vmul.f32 %v620, %v953
        %v961 = vmul.f32 %v621, %v957
        %v962 = vmul.f32 %v622, %v953
        %v963 = vmul.f32 %v623, %v957
        %v964 = vmul.f32 %v624, %v953
        %v965 = vmul.f32 %v625, %v957
        %966 = vst [vmem:[%s312] sm:$0xff] %v958
        %967 = vst [vmem:[%s312 + $0x8] sm:$0xff] %v959
        %968 = vst [vmem:[%s312 + $0x10] sm:$0xff] %v960
        %969 = vst [vmem:[%s312 + $0x18] sm:$0xff] %v961
        %970 = vst [vmem:[%s312 + $0x20] sm:$0xff] %v962
        %971 = vst [vmem:[%s312 + $0x28] sm:$0xff] %v963
        %972 = vst [vmem:[%s312 + $0x30] sm:$0xff] %v964
        %973 = vst [vmem:[%s312 + $0x38] sm:$0xff] %v965
        %s974 = sand.u32 %s186, 1
        %s975 = scalar_lea.sflag [#allocation5], %s974
        %s976 = sand.u32 %s186, 1
        %s977 = smul.addr %s976, 64
        %s978 = scalar_lea.vmem [#allocation8], %s977
        // Predicated region
        $region57: #{tpu_custom_call.1} parent=47 // pred_check
          %p979 = pneg %p196
        $region58: #{tpu_custom_call.1} parent=47 // pred_check_branch
          %981 = sbr.rel (%p979) target = $region60
        $region59: #{tpu_custom_call.1} parent=47 // pred_region
          %s983 = ssub.s32 1024, 1024
          %984 = vsyncadd %s975, %s983
          %s985 = smul.addr %s26, 8
          %s986 = smul.addr %s985, 128
          %s987 = scalar_lea.hbm %s7, %s986
          %s988 = sshll.u32 %s978, 4
          %s989 = int_to_ptr.vmem [resolvable:$true] %s988
          %994 = dma.vmem_to_hbm [thread:$0]  %s989, 1024, %s987, %s975, 256, 256, 16
        $region60: #{tpu_custom_call.1} parent=47 // pred_fallthru
          _
      $region48: #{tpu_custom_call.1} parent=5 // pred_fallthru
        _
      %p995 = scmp.le.s32.totalorder 2, %s21
      // Predicated region
      $region61: #{tpu_custom_call.1} parent=5 // pred_check
        %p996 = pneg %p995
      $region62: #{tpu_custom_call.1} parent=5 // pred_check_branch
        %998 = sbr.rel (%p996) target = $region64
      $region63: #{tpu_custom_call.1} parent=5 // pred_region
        %s999 = ssub.s32 %s21, 2
        // Predicated region
        $region65: #{tpu_custom_call.1} parent=63 // pred_check
          %p1000 = pneg %p202
        $region66: #{tpu_custom_call.1} parent=63 // pred_check_branch
          %1002 = sbr.rel (%p1000) target = $region68
        $region67: #{tpu_custom_call.1} parent=63 // pred_region
          %s1003 = sand.u32 %s187, 1
          %s1004 = scalar_lea.sflag [#allocation5], %s1003
          %s1005 = sand.u32 %s187, 1
          %s1006 = smul.addr %s1005, 64
          %s1007 = scalar_lea.vmem [#allocation8], %s1006
          %1008 = dma.done %s1004, 1024
        $region68: #{tpu_custom_call.1} parent=63 // pred_fallthru
          _
      $region64: #{tpu_custom_call.1} parent=5 // pred_fallthru
        _
    $region6: #{tpu_custom_call.1} parent=1 // loop_footer
      %s25 = sadd.s32 1, %s21
    $region7: #{tpu_custom_call.1} parent=1 // loop_footer_branch
      %20 = sbr.rel target = $region3
    $region8: #{tpu_custom_call.1} parent=1 // loop_exit
      _
    %1009 = vsyncpa [#allocation4], 1
    %s1010 = scalar_lea.sflag [#allocation4], 1
    %1011 = vsyncpa %s1010, 1
    %1012 = vsyncpa [#allocation7], 1
    %1013 = vsyncpa [#allocation5], 1
    %s1014 = scalar_lea.sflag [#allocation5], 1
    %1015 = vsyncpa %s1014, 1

</llo_original>
